<compile_context>
chip_gen: v7x
topology: tpu7x:2x2x1
jax: 0.10.0
libtpu: 0.0.40
codegen_flags: <defaults>
</compile_context>

<pallas_src>
import functools

import jax
import jax.numpy as jnp
from jax.experimental import pallas as pl
from jax.experimental.pallas import tpu as pltpu


# ---------------------------------------------------------------------------
# Kernel
# ---------------------------------------------------------------------------
def _mlp_kernel(img_ref, txt_ref, w1i_ref, w1t_ref, b1_ref, w2_ref, b2_ref, out_ref):
    img = img_ref[...]
    txt = txt_ref[...]
    # Only cast if the caller didn't already hand us bf16 (preferred path).
    if img.dtype != jnp.bfloat16:
        img = img.astype(jnp.bfloat16)
    if txt.dtype != jnp.bfloat16:
        txt = txt.astype(jnp.bfloat16)

    # First linear, split across the two modalities (concat folded away).
    h = jnp.dot(img, w1i_ref[...], preferred_element_type=jnp.float32)
    h = h + jnp.dot(txt, w1t_ref[...], preferred_element_type=jnp.float32)

    # Bias + ReLU in f32 (VPU).
    h = jnp.maximum(h + b1_ref[...], 0.0)

    # Second linear (classes padded to a lane-dense 128-wide tile) + bias.
    out = jnp.dot(h.astype(jnp.bfloat16), w2_ref[...],
                  preferred_element_type=jnp.float32)
    out_ref[...] = (out + b2_ref[...]).astype(out_ref.dtype)


# ---------------------------------------------------------------------------
# Params
# ---------------------------------------------------------------------------
def init_params(key, img_dim=512, text_dim=768, hidden_dim=256, num_classes=2):
    """Raw parameters, stored as (in, out) == PyTorch weight.T, float32."""
    k1, k2, k3, k4 = jax.random.split(key, 4)
    in_dim = img_dim + text_dim
    w1 = jax.random.normal(k1, (in_dim, hidden_dim), jnp.float32) * 0.02
    b1 = jax.random.normal(k2, (hidden_dim,), jnp.float32) * 0.02
    w2 = jax.random.normal(k3, (hidden_dim, num_classes), jnp.float32) * 0.02
    b2 = jax.random.normal(k4, (num_classes,), jnp.float32) * 0.02
    return {"w1": w1, "b1": b1, "w2": w2, "b2": b2}


def prepare_params(params, img_dim, *, padded_classes=128):
    """One-time prep: split w1 by modality, pad classes to >=128, cast weights to bf16.

    Returns {"weights": {arrays...}, "num_classes": python int}.  The int stays
    OUTSIDE the jit-traced pytree so slicing with it remains static.
    """
    hidden = params["w1"].shape[1]
    num_classes = int(params["w2"].shape[1])
    pc = max(padded_classes, ((num_classes + 127) // 128) * 128)

    w1_img = params["w1"][:img_dim, :].astype(jnp.bfloat16)       # (img_dim, hidden)
    w1_txt = params["w1"][img_dim:, :].astype(jnp.bfloat16)       # (text_dim, hidden)
    b1 = params["b1"].reshape(1, hidden).astype(jnp.float32)      # (1, hidden)

    w2 = jnp.zeros((hidden, pc), jnp.bfloat16)
    w2 = w2.at[:, :num_classes].set(params["w2"].astype(jnp.bfloat16))
    b2 = jnp.zeros((1, pc), jnp.float32)
    b2 = b2.at[0, :num_classes].set(params["b2"].astype(jnp.float32))

    weights = {"w1_img": w1_img, "w1_txt": w1_txt, "b1": b1, "w2": w2, "b2": b2}
    return {"weights": weights, "num_classes": num_classes}


# ---------------------------------------------------------------------------
# Forward
# ---------------------------------------------------------------------------
def _round_up(x, m):
    return ((x + m - 1) // m) * m


def _default_tm(B):
    if B < 512:
        # small batch: one or a few steps; latency/launch bound anyway.
        return max(8, _round_up(min(B, 128), 8))
    # large batch: target 512-row tiles (≈85% of HBM roofline vs ≈29% at 128),
    # but guarantee >= 2 grid steps so both v7x TensorCores get work on the
    # "parallel" batch axis (v5e/v6e are single-TC; extra steps are harmless).
    return min(512, _round_up(B // 2, 128))


@functools.partial(
    jax.jit, static_argnames=("num_classes", "tm", "return_padded", "out_dtype"))
def _forward_impl(img_feat, text_feat, weights, *, num_classes, tm,
                  return_padded, out_dtype):
    B, img_dim = img_feat.shape
    text_dim = text_feat.shape[1]
    hidden = weights["w1_img"].shape[1]
    pc = weights["w2"].shape[1]                       # padded classes (>=128)

    Bp = pl.cdiv(B, tm) * tm
    if Bp != B:
        img_feat = jnp.pad(img_feat, ((0, Bp - B), (0, 0)))
        text_feat = jnp.pad(text_feat, ((0, Bp - B), (0, 0)))

    grid = (Bp // tm,)

    compiler_kwargs = dict(dimension_semantics=("parallel",))
    if tm > 512:
        # v5e's default scoped VMEM is 16 MiB; very large tiles need headroom.
        compiler_kwargs["vmem_limit_bytes"] = 64 << 20

    out_padded = pl.pallas_call(
        _mlp_kernel,
        out_shape=jax.ShapeDtypeStruct((Bp, pc), out_dtype),
        grid_spec=pltpu.PrefetchScalarGridSpec(
            num_scalar_prefetch=0,
            grid=grid,
            in_specs=[
                # batch-tiled activations
                pl.BlockSpec((tm, img_dim), lambda i: (i, 0)),
                pl.BlockSpec((tm, text_dim), lambda i: (i, 0)),
                # VMEM-resident weights / biases (same block every grid step)
                pl.BlockSpec((img_dim, hidden), lambda i: (0, 0)),
                pl.BlockSpec((text_dim, hidden), lambda i: (0, 0)),
                pl.BlockSpec((1, hidden), lambda i: (0, 0)),
                pl.BlockSpec((hidden, pc), lambda i: (0, 0)),
                pl.BlockSpec((1, pc), lambda i: (0, 0)),
            ],
            out_specs=pl.BlockSpec((tm, pc), lambda i: (i, 0)),
        ),
        compiler_params=pltpu.CompilerParams(**compiler_kwargs),
    )(img_feat, text_feat,
      weights["w1_img"], weights["w1_txt"], weights["b1"],
      weights["w2"], weights["b2"])

    if return_padded:
        # Consumer must mask rows >= B; cols >= num_classes are exactly zero,
        # rows >= B contain ReLU(b1) @ w2 + b2 garbage.
        return out_padded
    return out_padded[:B, :num_classes]


def multimodal_classifier_forward(img_feat, text_feat, prepped, *, tm=None,
                                  return_padded=False, out_dtype=jnp.bfloat16):
    """prepped: output of prepare_params. Feed bf16 activations for best throughput."""
    B = img_feat.shape[0]
    if tm is None:
        tm = _default_tm(B)
    return _forward_impl(
        img_feat, text_feat, prepped["weights"],
        num_classes=prepped["num_classes"], tm=tm,
        return_padded=return_padded, out_dtype=out_dtype)


# ---------------------------------------------------------------------------
# Reference (pure JAX, f32 weights — matches the PyTorch module)
# ---------------------------------------------------------------------------
def reference_forward(img_feat, text_feat, params):
    fused = jnp.concatenate([img_feat.astype(jnp.float32),
                             text_feat.astype(jnp.float32)], axis=1)
    h = jnp.maximum(fused @ params["w1"] + params["b1"], 0.0)
    return h @ params["w2"] + params["b2"]


if __name__ == "__main__":
    B, IMG_DIM, TEXT_DIM, HIDDEN, NUM_CLASSES = 8, 512, 768, 256, 2

    key = jax.random.PRNGKey(0)
    k_img, k_txt, k_par = jax.random.split(key, 3)

    # Upstream encoders emit bf16 (halves the dominant activation HBM stream).
    img_feat = jax.random.normal(k_img, (B, IMG_DIM), jnp.float32).astype(jnp.bfloat16)
    text_feat = jax.random.normal(k_txt, (B, TEXT_DIM), jnp.float32).astype(jnp.bfloat16)
    params = init_params(k_par, IMG_DIM, TEXT_DIM, HIDDEN, NUM_CLASSES)

    # One-time param prep (split / pad / bf16 cast) — off the per-call path.
    prepped = prepare_params(params, IMG_DIM)
    prepped["weights"] = jax.tree_util.tree_map(jax.block_until_ready,
                                                prepped["weights"])

    out = multimodal_classifier_forward(img_feat, text_feat, prepped)
    out = jax.block_until_ready(out)

    ref = reference_forward(img_feat, text_feat, params)
    assert out.shape == (B, NUM_CLASSES), out.shape
    # bf16 weights/activations/logits => looser tolerance than pure-f32 parity.
    err = float(jnp.max(jnp.abs(out.astype(jnp.float32) - ref)))
    assert jnp.allclose(out.astype(jnp.float32), ref, atol=2e-2, rtol=2e-2), err

    print("KERNEL_OK")
</pallas_src>

<mosaic_0001>
module attributes {stable_mosaic.version = 11 : i64} {
  func.func @_mlp_kernel(%arg0: i32, %arg1: memref<8x512xbf16, #tpu.memory_space<vmem>>, %arg2: memref<8x768xbf16, #tpu.memory_space<vmem>>, %arg3: memref<512x256xbf16, #tpu.memory_space<vmem>>, %arg4: memref<768x256xbf16, #tpu.memory_space<vmem>>, %arg5: memref<1x256xf32, #tpu.memory_space<vmem>>, %arg6: memref<256x128xbf16, #tpu.memory_space<vmem>>, %arg7: memref<1x128xf32, #tpu.memory_space<vmem>>, %arg8: memref<8x128xbf16, #tpu.memory_space<vmem>>) attributes {dimension_semantics = [#tpu.dimension_semantics<parallel>], iteration_bounds = array<i64: 1>, scalar_prefetch = 0 : i64, scratch_operands = 0 : i64, tpu.core_type = #tpu.core_type<tc>, window_params = [{transform_indices = @transform_0, window_bounds = array<i64: 8, 512>}, {transform_indices = @transform_1, window_bounds = array<i64: 8, 768>}, {pipeline_mode = #tpu.pipeline_mode<synchronous>, transform_indices = @transform_2, window_bounds = array<i64: 512, 256>}, {pipeline_mode = #tpu.pipeline_mode<synchronous>, transform_indices = @transform_3, window_bounds = array<i64: 768, 256>}, {pipeline_mode = #tpu.pipeline_mode<synchronous>, transform_indices = @transform_4, window_bounds = array<i64: 1, 256>}, {pipeline_mode = #tpu.pipeline_mode<synchronous>, transform_indices = @transform_5, window_bounds = array<i64: 256, 128>}, {pipeline_mode = #tpu.pipeline_mode<synchronous>, transform_indices = @transform_6, window_bounds = array<i64: 1, 128>}, {transform_indices = @transform_7, window_bounds = array<i64: 8, 128>}]} {
    %c0 = arith.constant 0 : index
    %c0_0 = arith.constant 0 : index
    %0 = vector.load %arg1[%c0, %c0_0] : memref<8x512xbf16, #tpu.memory_space<vmem>>, vector<8x512xbf16>
    %c0_1 = arith.constant 0 : index
    %c0_2 = arith.constant 0 : index
    %1 = vector.load %arg2[%c0_1, %c0_2] : memref<8x768xbf16, #tpu.memory_space<vmem>>, vector<8x768xbf16>
    %c0_3 = arith.constant 0 : index
    %c0_4 = arith.constant 0 : index
    %2 = vector.load %arg3[%c0_3, %c0_4] : memref<512x256xbf16, #tpu.memory_space<vmem>>, vector<512x256xbf16>
    %cst = arith.constant dense<0.000000e+00> : vector<8x256xf32>
    %3 = tpu.matmul %0, %2, %cst {dimension_numbers = #tpu.dot_dimension_numbers<[1], [0], [0], [1], [0, 0, 1, 1], [], []>} : vector<8x512xbf16>, vector<512x256xbf16>, vector<8x256xf32> -> vector<8x256xf32>
    %c0_5 = arith.constant 0 : index
    %c0_6 = arith.constant 0 : index
    %4 = vector.load %arg4[%c0_5, %c0_6] : memref<768x256xbf16, #tpu.memory_space<vmem>>, vector<768x256xbf16>
    %cst_7 = arith.constant dense<0.000000e+00> : vector<8x256xf32>
    %5 = tpu.matmul %1, %4, %cst_7 {dimension_numbers = #tpu.dot_dimension_numbers<[1], [0], [0], [1], [0, 0, 1, 1], [], []>} : vector<8x768xbf16>, vector<768x256xbf16>, vector<8x256xf32> -> vector<8x256xf32>
    %6 = arith.addf %3, %5 : vector<8x256xf32>
    %c0_8 = arith.constant 0 : index
    %c0_9 = arith.constant 0 : index
    %7 = vector.load %arg5[%c0_8, %c0_9] : memref<1x256xf32, #tpu.memory_space<vmem>>, vector<1x256xf32>
    %8 = vector.broadcast %7 : vector<1x256xf32> to vector<8x256xf32>
    %9 = arith.addf %6, %8 : vector<8x256xf32>
    %cst_10 = arith.constant 0.000000e+00 : f32
    %10 = vector.broadcast %cst_10 : f32 to vector<8x256xf32>
    %11 = arith.maximumf %9, %10 : vector<8x256xf32>
    %12 = arith.truncf %11 : vector<8x256xf32> to vector<8x256xbf16>
    %c0_11 = arith.constant 0 : index
    %c0_12 = arith.constant 0 : index
    %13 = vector.load %arg6[%c0_11, %c0_12] : memref<256x128xbf16, #tpu.memory_space<vmem>>, vector<256x128xbf16>
    %cst_13 = arith.constant dense<0.000000e+00> : vector<8x128xf32>
    %14 = tpu.matmul %12, %13, %cst_13 {dimension_numbers = #tpu.dot_dimension_numbers<[1], [0], [0], [1], [0, 0, 1, 1], [], []>} : vector<8x256xbf16>, vector<256x128xbf16>, vector<8x128xf32> -> vector<8x128xf32>
    %c0_14 = arith.constant 0 : index
    %c0_15 = arith.constant 0 : index
    %15 = vector.load %arg7[%c0_14, %c0_15] : memref<1x128xf32, #tpu.memory_space<vmem>>, vector<1x128xf32>
    %16 = vector.broadcast %15 : vector<1x128xf32> to vector<8x128xf32>
    %17 = arith.addf %14, %16 : vector<8x128xf32>
    %18 = arith.truncf %17 : vector<8x128xf32> to vector<8x128xbf16>
    %c0_16 = arith.constant 0 : index
    %c0_17 = arith.constant 0 : index
    %19 = vector.load %arg8[%c0_16, %c0_17] : memref<8x128xbf16, #tpu.memory_space<vmem>>, vector<8x128xbf16>
    tpu.vector_store %arg8[%c0_16, %c0_17], %18 {strides = array<i32>} : memref<8x128xbf16, #tpu.memory_space<vmem>>, vector<8x128xbf16>,
    return
  }
  func.func @transform_0(%arg0: i32) -> (i32, i32) {
    %c0_i32 = arith.constant 0 : i32
    %c0_i32_0 = arith.constant 0 : i32
    return %arg0, %c0_i32 : i32, i32
  }
  func.func @transform_1(%arg0: i32) -> (i32, i32) {
    %c0_i32 = arith.constant 0 : i32
    %c0_i32_0 = arith.constant 0 : i32
    return %arg0, %c0_i32 : i32, i32
  }
  func.func @transform_2(%arg0: i32) -> (i32, i32) {
    %c0_i32 = arith.constant 0 : i32
    %c0_i32_0 = arith.constant 0 : i32
    %c0_i32_1 = arith.constant 0 : i32
    return %c0_i32, %c0_i32_0 : i32, i32
  }
  func.func @transform_3(%arg0: i32) -> (i32, i32) {
    %c0_i32 = arith.constant 0 : i32
    %c0_i32_0 = arith.constant 0 : i32
    %c0_i32_1 = arith.constant 0 : i32
    return %c0_i32, %c0_i32_0 : i32, i32
  }
  func.func @transform_4(%arg0: i32) -> (i32, i32) {
    %c0_i32 = arith.constant 0 : i32
    %c0_i32_0 = arith.constant 0 : i32
    %c0_i32_1 = arith.constant 0 : i32
    return %c0_i32, %c0_i32_0 : i32, i32
  }
  func.func @transform_5(%arg0: i32) -> (i32, i32) {
    %c0_i32 = arith.constant 0 : i32
    %c0_i32_0 = arith.constant 0 : i32
    %c0_i32_1 = arith.constant 0 : i32
    return %c0_i32, %c0_i32_0 : i32, i32
  }
  func.func @transform_6(%arg0: i32) -> (i32, i32) {
    %c0_i32 = arith.constant 0 : i32
    %c0_i32_0 = arith.constant 0 : i32
    %c0_i32_1 = arith.constant 0 : i32
    return %c0_i32, %c0_i32_0 : i32, i32
  }
  func.func @transform_7(%arg0: i32) -> (i32, i32) {
    %c0_i32 = arith.constant 0 : i32
    %c0_i32_0 = arith.constant 0 : i32
    return %arg0, %c0_i32 : i32, i32
  }
}

</mosaic_0001>

<llo_original>
// kernel: _forward_impl.1
$region0: #{_forward_impl.1}
  #allocation0 [shape = 'u32[]', space=smem, size = 0x4, offset = 0x4, fixed_abs, tag = 'smem constant byte address 0x4 - core index']
  #allocation1 [shape = 'u32[144,128]{1,0:T(1,128)}', space=vmem, size = 0x12000, scoped, tag = 'internal scratch']
  %s0 = inlined_call_operand.hbm [shape: bf16[8,512], index: 0, kind: input, shape index: {}]
  %s1 = inlined_call_operand.hbm [shape: bf16[8,768], index: 1, kind: input, shape index: {}]
  %s2 = inlined_call_operand.hbm [shape: bf16[512,256], index: 2, kind: input, shape index: {}]
  %s3 = inlined_call_operand.hbm [shape: bf16[768,256], index: 3, kind: input, shape index: {}]
  %s4 = inlined_call_operand.vmem [shape: f32[1,256], index: 4, kind: input, shape index: {}]
  %s5 = inlined_call_operand.hbm [shape: bf16[256,128], index: 5, kind: input, shape index: {}]
  %s6 = inlined_call_operand.vmem [shape: f32[1,128], index: 6, kind: input, shape index: {}]
  %s7 = inlined_call_operand.vmem [shape: bf16[8,128], index: 7, kind: output, shape index: {}]
  %s8 = sld [smem:[#allocation0]]
  $region58: #{_forward_impl.1} parent=0
    _
  %s10 = ssub.s32 1, %s8
  %s11 = scalar_select 0, %s10, %s8
  $region1: #{_forward_impl.1} parent=0
    #allocation2 [shape = 'u8[8192]{0}', space=vmem, size = 0x2000, scoped, tag = 'input window, operand 0, single buffered']
    #allocation3 [shape = 's32[1]{0}', space=sflag, size = 0x4, scoped, tag = 'scoped memory for _forward_impl.1']
    #allocation4 [shape = 'u8[12288]{0}', space=vmem, size = 0x3000, scoped, tag = 'input window, operand 1, single buffered']
    #allocation5 [shape = 's32[1]{0}', space=sflag, size = 0x4, scoped, tag = 'scoped memory for _forward_impl.1']
    #allocation6 [shape = 'u8[262144]{0}', space=vmem, size = 0x40000, scoped, tag = 'input window, operand 2, single buffered']
    #allocation7 [shape = 'u8[393216]{0}', space=vmem, size = 0x60000, scoped, tag = 'input window, operand 3, single buffered']
    #allocation8 [shape = 's32[1]{0}', space=sflag, size = 0x4, scoped, tag = 'scoped memory for _forward_impl.1']
    #allocation9 [shape = 'u8[65536]{0}', space=vmem, size = 0x10000, scoped, tag = 'input window, operand 5, single buffered']
    %12 = vsyncpa [#allocation3], 0
    %13 = vsyncpa [#allocation5], 0
    %14 = vsyncpa [#allocation8], 0
    // Predicated region
    $region2: #{_forward_impl.1} parent=1 // pred_check
      _
    $region3: #{_forward_impl.1} parent=1 // pred_check_branch
      %16 = sbr.rel (0) target = $region5
    $region4: #{_forward_impl.1} parent=1 // pred_region
      %s18 = ssub.s32 256, 256
      %19 = vsyncadd [#allocation3], %s18
      %s21 = sshll.u32 [#allocation2], 4
      %s22 = int_to_ptr.vmem [resolvable:$true] %s21
      %24 = dma.hbm_to_vmem [thread:$0]  %s0, 256, %s22, [#allocation3]
    $region5: #{_forward_impl.1} parent=1 // pred_fallthru
      _
    // Predicated region
    $region6: #{_forward_impl.1} parent=1 // pred_check
      _
    $region7: #{_forward_impl.1} parent=1 // pred_check_branch
      %26 = sbr.rel (0) target = $region9
    $region8: #{_forward_impl.1} parent=1 // pred_region
      %s28 = ssub.s32 384, 384
      %29 = vsyncadd [#allocation5], %s28
      %s31 = sshll.u32 [#allocation4], 4
      %s32 = int_to_ptr.vmem [resolvable:$true] %s31
      %34 = dma.hbm_to_vmem [thread:$0]  %s1, 384, %s32, [#allocation5]
    $region9: #{_forward_impl.1} parent=1 // pred_fallthru
      _
    // Predicated region
    $region10: #{_forward_impl.1} parent=1 // pred_check
      _
    $region11: #{_forward_impl.1} parent=1 // pred_check_branch
      %36 = sbr.rel (0) target = $region13
    $region12: #{_forward_impl.1} parent=1 // pred_region
      %s38 = ssub.s32 8192, 8192
      %39 = vsyncadd [#allocation5], %s38
      %s40 = sshll.u32 [#allocation6], 4
      %s41 = int_to_ptr.vmem [resolvable:$true] %s40
      %46 = dma.hbm_to_vmem [thread:$0]  %s2, 8192, %s41, [#allocation5], 128, 128, 8
    $region13: #{_forward_impl.1} parent=1 // pred_fallthru
      _
    // Predicated region
    $region14: #{_forward_impl.1} parent=1 // pred_check
      _
    $region15: #{_forward_impl.1} parent=1 // pred_check_branch
      %48 = sbr.rel (0) target = $region17
    $region16: #{_forward_impl.1} parent=1 // pred_region
      %s50 = ssub.s32 12288, 12288
      %51 = vsyncadd [#allocation8], %s50
      %s52 = sshll.u32 [#allocation7], 4
      %s53 = int_to_ptr.vmem [resolvable:$true] %s52
      %58 = dma.hbm_to_vmem [thread:$0]  %s3, 12288, %s53, [#allocation8], 128, 128, 8
    $region17: #{_forward_impl.1} parent=1 // pred_fallthru
      _
    // Predicated region
    $region18: #{_forward_impl.1} parent=1 // pred_check
      _
    $region19: #{_forward_impl.1} parent=1 // pred_check_branch
      %60 = sbr.rel (0) target = $region21
    $region20: #{_forward_impl.1} parent=1 // pred_region
      _
    $region21: #{_forward_impl.1} parent=1 // pred_fallthru
      _
    // Predicated region
    $region22: #{_forward_impl.1} parent=1 // pred_check
      _
    $region23: #{_forward_impl.1} parent=1 // pred_check_branch
      %62 = sbr.rel (0) target = $region25
    $region24: #{_forward_impl.1} parent=1 // pred_region
      %s64 = ssub.s32 2048, 2048
      %65 = vsyncadd [#allocation8], %s64
      %s66 = sshll.u32 [#allocation9], 4
      %s67 = int_to_ptr.vmem [resolvable:$true] %s66
      %72 = dma.hbm_to_vmem [thread:$0]  %s5, 2048, %s67, [#allocation8], 64, 64, 4
    $region25: #{_forward_impl.1} parent=1 // pred_fallthru
      _
    // Predicated region
    $region26: #{_forward_impl.1} parent=1 // pred_check
      _
    $region27: #{_forward_impl.1} parent=1 // pred_check_branch
      %74 = sbr.rel (0) target = $region29
    $region28: #{_forward_impl.1} parent=1 // pred_region
      _
    $region29: #{_forward_impl.1} parent=1 // pred_fallthru
      _
    // Predicated region
    $region30: #{_forward_impl.1} parent=1 // pred_check
      _
    $region31: #{_forward_impl.1} parent=1 // pred_check_branch
      %76 = sbr.rel (0) target = $region33
    $region32: #{_forward_impl.1} parent=1 // pred_region
      %77 = dma.done [#allocation3], 256
    $region33: #{_forward_impl.1} parent=1 // pred_fallthru
      _
    // Predicated region
    $region34: #{_forward_impl.1} parent=1 // pred_check
      _
    $region35: #{_forward_impl.1} parent=1 // pred_check_branch
      %79 = sbr.rel (0) target = $region37
    $region36: #{_forward_impl.1} parent=1 // pred_region
      %80 = dma.done [#allocation5], 384
    $region37: #{_forward_impl.1} parent=1 // pred_fallthru
      _
    // Predicated region
    $region38: #{_forward_impl.1} parent=1 // pred_check
      _
    $region39: #{_forward_impl.1} parent=1 // pred_check_branch
      %82 = sbr.rel (0) target = $region41
    $region40: #{_forward_impl.1} parent=1 // pred_region
      %83 = dma.done [#allocation5], 8192
    $region41: #{_forward_impl.1} parent=1 // pred_fallthru
      _
    // Predicated region
    $region42: #{_forward_impl.1} parent=1 // pred_check
      _
    $region43: #{_forward_impl.1} parent=1 // pred_check_branch
      %85 = sbr.rel (0) target = $region45
    $region44: #{_forward_impl.1} parent=1 // pred_region
      %86 = dma.done [#allocation8], 12288
    $region45: #{_forward_impl.1} parent=1 // pred_fallthru
      _
    // Predicated region
    $region46: #{_forward_impl.1} parent=1 // pred_check
      _
    $region47: #{_forward_impl.1} parent=1 // pred_check_branch
      %88 = sbr.rel (0) target = $region49
    $region48: #{_forward_impl.1} parent=1 // pred_region
      %89 = dma.done [#allocation8], 2048
    $region49: #{_forward_impl.1} parent=1 // pred_fallthru
      _
    %v91 = vld [vmem:[#allocation2] sm:$0xff]
    %v92 = vld [vmem:[#allocation2 + $0x8] sm:$0xff]
    %v93 = vld [vmem:[#allocation4] sm:$0xff]
    %v94 = vld [vmem:[#allocation4 + $0x8] sm:$0xff]
    %v95 = vld [vmem:[#allocation4 + $0x10] sm:$0xff]
    %v96 = vld [vmem:[#allocation6] sm:$0xff]
    %v97 = vld [vmem:[#allocation6 + $0x8] sm:$0xff]
    %v98 = vld [vmem:[#allocation6 + $0x10] sm:$0xff]
    %v99 = vld [vmem:[#allocation6 + $0x18] sm:$0xff]
    %v100 = vld [vmem:[#allocation6 + $0x20] sm:$0xff]
    %v101 = vld [vmem:[#allocation6 + $0x28] sm:$0xff]
    %v102 = vld [vmem:[#allocation6 + $0x30] sm:$0xff]
    %v103 = vld [vmem:[#allocation6 + $0x38] sm:$0xff]
    %v104 = vld [vmem:[#allocation6 + $0x40] sm:$0xff]
    %v105 = vld [vmem:[#allocation6 + $0x48] sm:$0xff]
    %v106 = vld [vmem:[#allocation6 + $0x50] sm:$0xff]
    %v107 = vld [vmem:[#allocation6 + $0x58] sm:$0xff]
    %v108 = vld [vmem:[#allocation6 + $0x60] sm:$0xff]
    %v109 = vld [vmem:[#allocation6 + $0x68] sm:$0xff]
    %v110 = vld [vmem:[#allocation6 + $0x70] sm:$0xff]
    %v111 = vld [vmem:[#allocation6 + $0x78] sm:$0xff]
    %v112 = vld [vmem:[#allocation6 + $0x80] sm:$0xff]
    %v113 = vld [vmem:[#allocation6 + $0x88] sm:$0xff]
    %v114 = vld [vmem:[#allocation6 + $0x90] sm:$0xff]
    %v115 = vld [vmem:[#allocation6 + $0x98] sm:$0xff]
    %v116 = vld [vmem:[#allocation6 + $0xa0] sm:$0xff]
    %v117 = vld [vmem:[#allocation6 + $0xa8] sm:$0xff]
    %v118 = vld [vmem:[#allocation6 + $0xb0] sm:$0xff]
    %v119 = vld [vmem:[#allocation6 + $0xb8] sm:$0xff]
    %v120 = vld [vmem:[#allocation6 + $0xc0] sm:$0xff]
    %v121 = vld [vmem:[#allocation6 + $0xc8] sm:$0xff]
    %v122 = vld [vmem:[#allocation6 + $0xd0] sm:$0xff]
    %v123 = vld [vmem:[#allocation6 + $0xd8] sm:$0xff]
    %v124 = vld [vmem:[#allocation6 + $0xe0] sm:$0xff]
    %v125 = vld [vmem:[#allocation6 + $0xe8] sm:$0xff]
    %v126 = vld [vmem:[#allocation6 + $0xf0] sm:$0xff]
    %v127 = vld [vmem:[#allocation6 + $0xf8] sm:$0xff]
    %v128 = vld [vmem:[#allocation6 + $0x100] sm:$0xff]
    %v129 = vld [vmem:[#allocation6 + $0x108] sm:$0xff]
    %v130 = vld [vmem:[#allocation6 + $0x110] sm:$0xff]
    %v131 = vld [vmem:[#allocation6 + $0x118] sm:$0xff]
    %v132 = vld [vmem:[#allocation6 + $0x120] sm:$0xff]
    %v133 = vld [vmem:[#allocation6 + $0x128] sm:$0xff]
    %v134 = vld [vmem:[#allocation6 + $0x130] sm:$0xff]
    %v135 = vld [vmem:[#allocation6 + $0x138] sm:$0xff]
    %v136 = vld [vmem:[#allocation6 + $0x140] sm:$0xff]
    %v137 = vld [vmem:[#allocation6 + $0x148] sm:$0xff]
    %v138 = vld [vmem:[#allocation6 + $0x150] sm:$0xff]
    %v139 = vld [vmem:[#allocation6 + $0x158] sm:$0xff]
    %v140 = vld [vmem:[#allocation6 + $0x160] sm:$0xff]
    %v141 = vld [vmem:[#allocation6 + $0x168] sm:$0xff]
    %v142 = vld [vmem:[#allocation6 + $0x170] sm:$0xff]
    %v143 = vld [vmem:[#allocation6 + $0x178] sm:$0xff]
    %v144 = vld [vmem:[#allocation6 + $0x180] sm:$0xff]
    %v145 = vld [vmem:[#allocation6 + $0x188] sm:$0xff]
    %v146 = vld [vmem:[#allocation6 + $0x190] sm:$0xff]
    %v147 = vld [vmem:[#allocation6 + $0x198] sm:$0xff]
    %v148 = vld [vmem:[#allocation6 + $0x1a0] sm:$0xff]
    %v149 = vld [vmem:[#allocation6 + $0x1a8] sm:$0xff]
    %v150 = vld [vmem:[#allocation6 + $0x1b0] sm:$0xff]
    %v151 = vld [vmem:[#allocation6 + $0x1b8] sm:$0xff]
    %v152 = vld [vmem:[#allocation6 + $0x1c0] sm:$0xff]
    %v153 = vld [vmem:[#allocation6 + $0x1c8] sm:$0xff]
    %v154 = vld [vmem:[#allocation6 + $0x1d0] sm:$0xff]
    %v155 = vld [vmem:[#allocation6 + $0x1d8] sm:$0xff]
    %v156 = vld [vmem:[#allocation6 + $0x1e0] sm:$0xff]
    %v157 = vld [vmem:[#allocation6 + $0x1e8] sm:$0xff]
    %v158 = vld [vmem:[#allocation6 + $0x1f0] sm:$0xff]
    %v159 = vld [vmem:[#allocation6 + $0x1f8] sm:$0xff]
    %v160 = vld [vmem:[#allocation7] sm:$0xff]
    %v161 = vld [vmem:[#allocation7 + $0x8] sm:$0xff]
    %v162 = vld [vmem:[#allocation7 + $0x10] sm:$0xff]
    %v163 = vld [vmem:[#allocation7 + $0x18] sm:$0xff]
    %v164 = vld [vmem:[#allocation7 + $0x20] sm:$0xff]
    %v165 = vld [vmem:[#allocation7 + $0x28] sm:$0xff]
    %v166 = vld [vmem:[#allocation7 + $0x30] sm:$0xff]
    %v167 = vld [vmem:[#allocation7 + $0x38] sm:$0xff]
    %v168 = vld [vmem:[#allocation7 + $0x40] sm:$0xff]
    %v169 = vld [vmem:[#allocation7 + $0x48] sm:$0xff]
    %v170 = vld [vmem:[#allocation7 + $0x50] sm:$0xff]
    %v171 = vld [vmem:[#allocation7 + $0x58] sm:$0xff]
    %v172 = vld [vmem:[#allocation7 + $0x60] sm:$0xff]
    %v173 = vld [vmem:[#allocation7 + $0x68] sm:$0xff]
    %v174 = vld [vmem:[#allocation7 + $0x70] sm:$0xff]
    %v175 = vld [vmem:[#allocation7 + $0x78] sm:$0xff]
    %v176 = vld [vmem:[#allocation7 + $0x80] sm:$0xff]
    %v177 = vld [vmem:[#allocation7 + $0x88] sm:$0xff]
    %v178 = vld [vmem:[#allocation7 + $0x90] sm:$0xff]
    %v179 = vld [vmem:[#allocation7 + $0x98] sm:$0xff]
    %v180 = vld [vmem:[#allocation7 + $0xa0] sm:$0xff]
    %v181 = vld [vmem:[#allocation7 + $0xa8] sm:$0xff]
    %v182 = vld [vmem:[#allocation7 + $0xb0] sm:$0xff]
    %v183 = vld [vmem:[#allocation7 + $0xb8] sm:$0xff]
    %v184 = vld [vmem:[#allocation7 + $0xc0] sm:$0xff]
    %v185 = vld [vmem:[#allocation7 + $0xc8] sm:$0xff]
    %v186 = vld [vmem:[#allocation7 + $0xd0] sm:$0xff]
    %v187 = vld [vmem:[#allocation7 + $0xd8] sm:$0xff]
    %v188 = vld [vmem:[#allocation7 + $0xe0] sm:$0xff]
    %v189 = vld [vmem:[#allocation7 + $0xe8] sm:$0xff]
    %v190 = vld [vmem:[#allocation7 + $0xf0] sm:$0xff]
    %v191 = vld [vmem:[#allocation7 + $0xf8] sm:$0xff]
    %v192 = vld [vmem:[#allocation7 + $0x100] sm:$0xff]
    %v193 = vld [vmem:[#allocation7 + $0x108] sm:$0xff]
    %v194 = vld [vmem:[#allocation7 + $0x110] sm:$0xff]
    %v195 = vld [vmem:[#allocation7 + $0x118] sm:$0xff]
    %v196 = vld [vmem:[#allocation7 + $0x120] sm:$0xff]
    %v197 = vld [vmem:[#allocation7 + $0x128] sm:$0xff]
    %v198 = vld [vmem:[#allocation7 + $0x130] sm:$0xff]
    %v199 = vld [vmem:[#allocation7 + $0x138] sm:$0xff]
    %v200 = vld [vmem:[#allocation7 + $0x140] sm:$0xff]
    %v201 = vld [vmem:[#allocation7 + $0x148] sm:$0xff]
    %v202 = vld [vmem:[#allocation7 + $0x150] sm:$0xff]
    %v203 = vld [vmem:[#allocation7 + $0x158] sm:$0xff]
    %v204 = vld [vmem:[#allocation7 + $0x160] sm:$0xff]
    %v205 = vld [vmem:[#allocation7 + $0x168] sm:$0xff]
    %v206 = vld [vmem:[#allocation7 + $0x170] sm:$0xff]
    %v207 = vld [vmem:[#allocation7 + $0x178] sm:$0xff]
    %v208 = vld [vmem:[#allocation7 + $0x180] sm:$0xff]
    %v209 = vld [vmem:[#allocation7 + $0x188] sm:$0xff]
    %v210 = vld [vmem:[#allocation7 + $0x190] sm:$0xff]
    %v211 = vld [vmem:[#allocation7 + $0x198] sm:$0xff]
    %v212 = vld [vmem:[#allocation7 + $0x1a0] sm:$0xff]
    %v213 = vld [vmem:[#allocation7 + $0x1a8] sm:$0xff]
    %v214 = vld [vmem:[#allocation7 + $0x1b0] sm:$0xff]
    %v215 = vld [vmem:[#allocation7 + $0x1b8] sm:$0xff]
    %v216 = vld [vmem:[#allocation7 + $0x1c0] sm:$0xff]
    %v217 = vld [vmem:[#allocation7 + $0x1c8] sm:$0xff]
    %v218 = vld [vmem:[#allocation7 + $0x1d0] sm:$0xff]
    %v219 = vld [vmem:[#allocation7 + $0x1d8] sm:$0xff]
    %v220 = vld [vmem:[#allocation7 + $0x1e0] sm:$0xff]
    %v221 = vld [vmem:[#allocation7 + $0x1e8] sm:$0xff]
    %v222 = vld [vmem:[#allocation7 + $0x1f0] sm:$0xff]
    %v223 = vld [vmem:[#allocation7 + $0x1f8] sm:$0xff]
    %v224 = vld [vmem:[#allocation7 + $0x200] sm:$0xff]
    %v225 = vld [vmem:[#allocation7 + $0x208] sm:$0xff]
    %v226 = vld [vmem:[#allocation7 + $0x210] sm:$0xff]
    %v227 = vld [vmem:[#allocation7 + $0x218] sm:$0xff]
    %v228 = vld [vmem:[#allocation7 + $0x220] sm:$0xff]
    %v229 = vld [vmem:[#allocation7 + $0x228] sm:$0xff]
    %v230 = vld [vmem:[#allocation7 + $0x230] sm:$0xff]
    %v231 = vld [vmem:[#allocation7 + $0x238] sm:$0xff]
    %v232 = vld [vmem:[#allocation7 + $0x240] sm:$0xff]
    %v233 = vld [vmem:[#allocation7 + $0x248] sm:$0xff]
    %v234 = vld [vmem:[#allocation7 + $0x250] sm:$0xff]
    %v235 = vld [vmem:[#allocation7 + $0x258] sm:$0xff]
    %v236 = vld [vmem:[#allocation7 + $0x260] sm:$0xff]
    %v237 = vld [vmem:[#allocation7 + $0x268] sm:$0xff]
    %v238 = vld [vmem:[#allocation7 + $0x270] sm:$0xff]
    %v239 = vld [vmem:[#allocation7 + $0x278] sm:$0xff]
    %v240 = vld [vmem:[#allocation7 + $0x280] sm:$0xff]
    %v241 = vld [vmem:[#allocation7 + $0x288] sm:$0xff]
    %v242 = vld [vmem:[#allocation7 + $0x290] sm:$0xff]
    %v243 = vld [vmem:[#allocation7 + $0x298] sm:$0xff]
    %v244 = vld [vmem:[#allocation7 + $0x2a0] sm:$0xff]
    %v245 = vld [vmem:[#allocation7 + $0x2a8] sm:$0xff]
    %v246 = vld [vmem:[#allocation7 + $0x2b0] sm:$0xff]
    %v247 = vld [vmem:[#allocation7 + $0x2b8] sm:$0xff]
    %v248 = vld [vmem:[#allocation7 + $0x2c0] sm:$0xff]
    %v249 = vld [vmem:[#allocation7 + $0x2c8] sm:$0xff]
    %v250 = vld [vmem:[#allocation7 + $0x2d0] sm:$0xff]
    %v251 = vld [vmem:[#allocation7 + $0x2d8] sm:$0xff]
    %v252 = vld [vmem:[#allocation7 + $0x2e0] sm:$0xff]
    %v253 = vld [vmem:[#allocation7 + $0x2e8] sm:$0xff]
    %v254 = vld [vmem:[#allocation7 + $0x2f0] sm:$0xff]
    %v255 = vld [vmem:[#allocation7 + $0x2f8] sm:$0xff]
    %v259 = vunpack.c.l.b16 %v93
    %v260 = vunpack.c.h.b16 %v93
    %v261 = vunpack.c.l.b16 %v94
    %v262 = vunpack.c.h.b16 %v94
    %v263 = vunpack.c.l.b16 %v95
    %v264 = vunpack.c.h.b16 %v95
    %v265 = vpack.c.b16 %v259, %v259
    %v266 = vpack.c.b16 %v260, %v260
    %v267 = vpack.c.b16 %v261, %v261
    %v268 = vpack.c.b16 %v262, %v262
    %v269 = vpack.c.b16 %v263, %v263
    %v270 = vpack.c.b16 %v264, %v264
    %v373 = vunpack.c.l.b16 %v160
    %v374 = vunpack.c.h.b16 %v160
    %v375 = vunpack.c.l.b16 %v161
    %v376 = vunpack.c.h.b16 %v161
    %v377 = vunpack.c.l.b16 %v162
    %v378 = vunpack.c.h.b16 %v162
    %v379 = vunpack.c.l.b16 %v163
    %v380 = vunpack.c.h.b16 %v163
    %v381 = vunpack.c.l.b16 %v164
    %v382 = vunpack.c.h.b16 %v164
    %v383 = vunpack.c.l.b16 %v165
    %v384 = vunpack.c.h.b16 %v165
    %v385 = vunpack.c.l.b16 %v166
    %v386 = vunpack.c.h.b16 %v166
    %v387 = vunpack.c.l.b16 %v167
    %v388 = vunpack.c.h.b16 %v167
    %v389 = vunpack.c.l.b16 %v168
    %v390 = vunpack.c.h.b16 %v168
    %v391 = vunpack.c.l.b16 %v169
    %v392 = vunpack.c.h.b16 %v169
    %v393 = vunpack.c.l.b16 %v170
    %v394 = vunpack.c.h.b16 %v170
    %v395 = vunpack.c.l.b16 %v171
    %v396 = vunpack.c.h.b16 %v171
    %v397 = vunpack.c.l.b16 %v172
    %v398 = vunpack.c.h.b16 %v172
    %v399 = vunpack.c.l.b16 %v173
    %v400 = vunpack.c.h.b16 %v173
    %v401 = vunpack.c.l.b16 %v174
    %v402 = vunpack.c.h.b16 %v174
    %v403 = vunpack.c.l.b16 %v175
    %v404 = vunpack.c.h.b16 %v175
    %v405 = vunpack.c.l.b16 %v176
    %v406 = vunpack.c.h.b16 %v176
    %v407 = vunpack.c.l.b16 %v177
    %v408 = vunpack.c.h.b16 %v177
    %v409 = vunpack.c.l.b16 %v178
    %v410 = vunpack.c.h.b16 %v178
    %v411 = vunpack.c.l.b16 %v179
    %v412 = vunpack.c.h.b16 %v179
    %v413 = vunpack.c.l.b16 %v180
    %v414 = vunpack.c.h.b16 %v180
    %v415 = vunpack.c.l.b16 %v181
    %v416 = vunpack.c.h.b16 %v181
    %v417 = vunpack.c.l.b16 %v182
    %v418 = vunpack.c.h.b16 %v182
    %v419 = vunpack.c.l.b16 %v183
    %v420 = vunpack.c.h.b16 %v183
    %v421 = vunpack.c.l.b16 %v184
    %v422 = vunpack.c.h.b16 %v184
    %v423 = vunpack.c.l.b16 %v185
    %v424 = vunpack.c.h.b16 %v185
    %v425 = vunpack.c.l.b16 %v186
    %v426 = vunpack.c.h.b16 %v186
    %v427 = vunpack.c.l.b16 %v187
    %v428 = vunpack.c.h.b16 %v187
    %v429 = vunpack.c.l.b16 %v188
    %v430 = vunpack.c.h.b16 %v188
    %v431 = vunpack.c.l.b16 %v189
    %v432 = vunpack.c.h.b16 %v189
    %v433 = vunpack.c.l.b16 %v190
    %v434 = vunpack.c.h.b16 %v190
    %v435 = vunpack.c.l.b16 %v191
    %v436 = vunpack.c.h.b16 %v191
    %v437 = vunpack.c.l.b16 %v192
    %v438 = vunpack.c.h.b16 %v192
    %v439 = vunpack.c.l.b16 %v193
    %v440 = vunpack.c.h.b16 %v193
    %v441 = vunpack.c.l.b16 %v194
    %v442 = vunpack.c.h.b16 %v194
    %v443 = vunpack.c.l.b16 %v195
    %v444 = vunpack.c.h.b16 %v195
    %v445 = vunpack.c.l.b16 %v196
    %v446 = vunpack.c.h.b16 %v196
    %v447 = vunpack.c.l.b16 %v197
    %v448 = vunpack.c.h.b16 %v197
    %v449 = vunpack.c.l.b16 %v198
    %v450 = vunpack.c.h.b16 %v198
    %v451 = vunpack.c.l.b16 %v199
    %v452 = vunpack.c.h.b16 %v199
    %v453 = vunpack.c.l.b16 %v200
    %v454 = vunpack.c.h.b16 %v200
    %v455 = vunpack.c.l.b16 %v201
    %v456 = vunpack.c.h.b16 %v201
    %v457 = vunpack.c.l.b16 %v202
    %v458 = vunpack.c.h.b16 %v202
    %v459 = vunpack.c.l.b16 %v203
    %v460 = vunpack.c.h.b16 %v203
    %v461 = vunpack.c.l.b16 %v204
    %v462 = vunpack.c.h.b16 %v204
    %v463 = vunpack.c.l.b16 %v205
    %v464 = vunpack.c.h.b16 %v205
    %v465 = vunpack.c.l.b16 %v206
    %v466 = vunpack.c.h.b16 %v206
    %v467 = vunpack.c.l.b16 %v207
    %v468 = vunpack.c.h.b16 %v207
    %v469 = vunpack.c.l.b16 %v208
    %v470 = vunpack.c.h.b16 %v208
    %v471 = vunpack.c.l.b16 %v209
    %v472 = vunpack.c.h.b16 %v209
    %v473 = vunpack.c.l.b16 %v210
    %v474 = vunpack.c.h.b16 %v210
    %v475 = vunpack.c.l.b16 %v211
    %v476 = vunpack.c.h.b16 %v211
    %v477 = vunpack.c.l.b16 %v212
    %v478 = vunpack.c.h.b16 %v212
    %v479 = vunpack.c.l.b16 %v213
    %v480 = vunpack.c.h.b16 %v213
    %v481 = vunpack.c.l.b16 %v214
    %v482 = vunpack.c.h.b16 %v214
    %v483 = vunpack.c.l.b16 %v215
    %v484 = vunpack.c.h.b16 %v215
    %v485 = vunpack.c.l.b16 %v216
    %v486 = vunpack.c.h.b16 %v216
    %v487 = vunpack.c.l.b16 %v217
    %v488 = vunpack.c.h.b16 %v217
    %v489 = vunpack.c.l.b16 %v218
    %v490 = vunpack.c.h.b16 %v218
    %v491 = vunpack.c.l.b16 %v219
    %v492 = vunpack.c.h.b16 %v219
    %v493 = vunpack.c.l.b16 %v220
    %v494 = vunpack.c.h.b16 %v220
    %v495 = vunpack.c.l.b16 %v221
    %v496 = vunpack.c.h.b16 %v221
    %v497 = vunpack.c.l.b16 %v222
    %v498 = vunpack.c.h.b16 %v222
    %v499 = vunpack.c.l.b16 %v223
    %v500 = vunpack.c.h.b16 %v223
    %v501 = vunpack.c.l.b16 %v224
    %v502 = vunpack.c.h.b16 %v224
    %v503 = vunpack.c.l.b16 %v225
    %v504 = vunpack.c.h.b16 %v225
    %v505 = vunpack.c.l.b16 %v226
    %v506 = vunpack.c.h.b16 %v226
    %v507 = vunpack.c.l.b16 %v227
    %v508 = vunpack.c.h.b16 %v227
    %v509 = vunpack.c.l.b16 %v228
    %v510 = vunpack.c.h.b16 %v228
    %v511 = vunpack.c.l.b16 %v229
    %v512 = vunpack.c.h.b16 %v229
    %v513 = vunpack.c.l.b16 %v230
    %v514 = vunpack.c.h.b16 %v230
    %v515 = vunpack.c.l.b16 %v231
    %v516 = vunpack.c.h.b16 %v231
    %v517 = vunpack.c.l.b16 %v232
    %v518 = vunpack.c.h.b16 %v232
    %v519 = vunpack.c.l.b16 %v233
    %v520 = vunpack.c.h.b16 %v233
    %v521 = vunpack.c.l.b16 %v234
    %v522 = vunpack.c.h.b16 %v234
    %v523 = vunpack.c.l.b16 %v235
    %v524 = vunpack.c.h.b16 %v235
    %v525 = vunpack.c.l.b16 %v236
    %v526 = vunpack.c.h.b16 %v236
    %v527 = vunpack.c.l.b16 %v237
    %v528 = vunpack.c.h.b16 %v237
    %v529 = vunpack.c.l.b16 %v238
    %v530 = vunpack.c.h.b16 %v238
    %v531 = vunpack.c.l.b16 %v239
    %v532 = vunpack.c.h.b16 %v239
    %v533 = vunpack.c.l.b16 %v240
    %v534 = vunpack.c.h.b16 %v240
    %v535 = vunpack.c.l.b16 %v241
    %v536 = vunpack.c.h.b16 %v241
    %v537 = vunpack.c.l.b16 %v242
    %v538 = vunpack.c.h.b16 %v242
    %v539 = vunpack.c.l.b16 %v243
    %v540 = vunpack.c.h.b16 %v243
    %v541 = vunpack.c.l.b16 %v244
    %v542 = vunpack.c.h.b16 %v244
    %v543 = vunpack.c.l.b16 %v245
    %v544 = vunpack.c.h.b16 %v245
    %v545 = vunpack.c.l.b16 %v246
    %v546 = vunpack.c.h.b16 %v246
    %v547 = vunpack.c.l.b16 %v247
    %v548 = vunpack.c.h.b16 %v247
    %v549 = vunpack.c.l.b16 %v248
    %v550 = vunpack.c.h.b16 %v248
    %v551 = vunpack.c.l.b16 %v249
    %v552 = vunpack.c.h.b16 %v249
    %v553 = vunpack.c.l.b16 %v250
    %v554 = vunpack.c.h.b16 %v250
    %v555 = vunpack.c.l.b16 %v251
    %v556 = vunpack.c.h.b16 %v251
    %v557 = vunpack.c.l.b16 %v252
    %v558 = vunpack.c.h.b16 %v252
    %v559 = vunpack.c.l.b16 %v253
    %v560 = vunpack.c.h.b16 %v253
    %v561 = vunpack.c.l.b16 %v254
    %v562 = vunpack.c.h.b16 %v254
    %v563 = vunpack.c.l.b16 %v255
    %v564 = vunpack.c.h.b16 %v255
    %v565 = vpack.c.b16 %v375, %v373
    %v566 = vpack.c.b16 %v376, %v374
    %v567 = vpack.c.b16 %v379, %v377
    %v568 = vpack.c.b16 %v380, %v378
    %v569 = vpack.c.b16 %v383, %v381
    %v570 = vpack.c.b16 %v384, %v382
    %v571 = vpack.c.b16 %v387, %v385
    %v572 = vpack.c.b16 %v388, %v386
    %v573 = vpack.c.b16 %v391, %v389
    %v574 = vpack.c.b16 %v392, %v390
    %v575 = vpack.c.b16 %v395, %v393
    %v576 = vpack.c.b16 %v396, %v394
    %v577 = vpack.c.b16 %v399, %v397
    %v578 = vpack.c.b16 %v400, %v398
    %v579 = vpack.c.b16 %v403, %v401
    %v580 = vpack.c.b16 %v404, %v402
    %v581 = vpack.c.b16 %v407, %v405
    %v582 = vpack.c.b16 %v408, %v406
    %v583 = vpack.c.b16 %v411, %v409
    %v584 = vpack.c.b16 %v412, %v410
    %v585 = vpack.c.b16 %v415, %v413
    %v586 = vpack.c.b16 %v416, %v414
    %v587 = vpack.c.b16 %v419, %v417
    %v588 = vpack.c.b16 %v420, %v418
    %v589 = vpack.c.b16 %v423, %v421
    %v590 = vpack.c.b16 %v424, %v422
    %v591 = vpack.c.b16 %v427, %v425
    %v592 = vpack.c.b16 %v428, %v426
    %v593 = vpack.c.b16 %v431, %v429
    %v594 = vpack.c.b16 %v432, %v430
    %v595 = vpack.c.b16 %v435, %v433
    %v596 = vpack.c.b16 %v436, %v434
    %v597 = vpack.c.b16 %v439, %v437
    %v598 = vpack.c.b16 %v440, %v438
    %v599 = vpack.c.b16 %v443, %v441
    %v600 = vpack.c.b16 %v444, %v442
    %v601 = vpack.c.b16 %v447, %v445
    %v602 = vpack.c.b16 %v448, %v446
    %v603 = vpack.c.b16 %v451, %v449
    %v604 = vpack.c.b16 %v452, %v450
    %v605 = vpack.c.b16 %v455, %v453
    %v606 = vpack.c.b16 %v456, %v454
    %v607 = vpack.c.b16 %v459, %v457
    %v608 = vpack.c.b16 %v460, %v458
    %v609 = vpack.c.b16 %v463, %v461
    %v610 = vpack.c.b16 %v464, %v462
    %v611 = vpack.c.b16 %v467, %v465
    %v612 = vpack.c.b16 %v468, %v466
    %v613 = vpack.c.b16 %v471, %v469
    %v614 = vpack.c.b16 %v472, %v470
    %v615 = vpack.c.b16 %v475, %v473
    %v616 = vpack.c.b16 %v476, %v474
    %v617 = vpack.c.b16 %v479, %v477
    %v618 = vpack.c.b16 %v480, %v478
    %v619 = vpack.c.b16 %v483, %v481
    %v620 = vpack.c.b16 %v484, %v482
    %v621 = vpack.c.b16 %v487, %v485
    %v622 = vpack.c.b16 %v488, %v486
    %v623 = vpack.c.b16 %v491, %v489
    %v624 = vpack.c.b16 %v492, %v490
    %v625 = vpack.c.b16 %v495, %v493
    %v626 = vpack.c.b16 %v496, %v494
    %v627 = vpack.c.b16 %v499, %v497
    %v628 = vpack.c.b16 %v500, %v498
    %v629 = vpack.c.b16 %v503, %v501
    %v630 = vpack.c.b16 %v504, %v502
    %v631 = vpack.c.b16 %v507, %v505
    %v632 = vpack.c.b16 %v508, %v506
    %v633 = vpack.c.b16 %v511, %v509
    %v634 = vpack.c.b16 %v512, %v510
    %v635 = vpack.c.b16 %v515, %v513
    %v636 = vpack.c.b16 %v516, %v514
    %v637 = vpack.c.b16 %v519, %v517
    %v638 = vpack.c.b16 %v520, %v518
    %v639 = vpack.c.b16 %v523, %v521
    %v640 = vpack.c.b16 %v524, %v522
    %v641 = vpack.c.b16 %v527, %v525
    %v642 = vpack.c.b16 %v528, %v526
    %v643 = vpack.c.b16 %v531, %v529
    %v644 = vpack.c.b16 %v532, %v530
    %v645 = vpack.c.b16 %v535, %v533
    %v646 = vpack.c.b16 %v536, %v534
    %v647 = vpack.c.b16 %v539, %v537
    %v648 = vpack.c.b16 %v540, %v538
    %v649 = vpack.c.b16 %v543, %v541
    %v650 = vpack.c.b16 %v544, %v542
    %v651 = vpack.c.b16 %v547, %v545
    %v652 = vpack.c.b16 %v548, %v546
    %v653 = vpack.c.b16 %v551, %v549
    %v654 = vpack.c.b16 %v552, %v550
    %v655 = vpack.c.b16 %v555, %v553
    %v656 = vpack.c.b16 %v556, %v554
    %v657 = vpack.c.b16 %v559, %v557
    %v658 = vpack.c.b16 %v560, %v558
    %v659 = vpack.c.b16 %v563, %v561
    %v660 = vpack.c.b16 %v564, %v562
    %757 = vmatprep.subr.bf16.mxu0 %v566
    %758 = vmatpush1.bf16.msra.mxu0 %v565
    %759 = vmatprep.subr.bf16.mxu0 %v568
    %760 = vmatpush1.bf16.msra.mxu0 %v567
    %761 = vmatprep.subr.bf16.mxu0 %v570
    %762 = vmatpush1.bf16.msra.mxu0 %v569
    %763 = vmatprep.subr.bf16.mxu0 %v572
    %764 = vmatpush1.bf16.msra.mxu0 %v571
    %765 = vmatprep.subr.bf16.mxu0 %v574
    %766 = vmatpush1.bf16.msra.mxu0 %v573
    %767 = vmatprep.subr.bf16.mxu0 %v576
    %768 = vmatpush1.bf16.msra.mxu0 %v575
    %769 = vmatprep.subr.bf16.mxu0 %v578
    %770 = vmatpush1.bf16.msra.mxu0 %v577
    %771 = vmatprep.subr.bf16.mxu0 %v580
    %772 = vmatpush1.bf16.msra.mxu0 %v579
    %773 = vmatprep.subr.bf16.mxu0 %v582
    %774 = vmatpush1.bf16.msra.mxu0 %v581
    %775 = vmatprep.subr.bf16.mxu0 %v584
    %776 = vmatpush1.bf16.msra.mxu0 %v583
    %777 = vmatprep.subr.bf16.mxu0 %v586
    %778 = vmatpush1.bf16.msra.mxu0 %v585
    %779 = vmatprep.subr.bf16.mxu0 %v588
    %780 = vmatpush1.bf16.msra.mxu0 %v587
    %781 = vmatprep.subr.bf16.mxu0 %v590
    %782 = vmatpush1.bf16.msra.mxu0 %v589
    %783 = vmatprep.subr.bf16.mxu0 %v592
    %784 = vmatpush1.bf16.msra.mxu0 %v591
    %785 = vmatprep.subr.bf16.mxu0 %v594
    %786 = vmatpush1.bf16.msra.mxu0 %v593
    %787 = vmatprep.subr.bf16.mxu0 %v596
    %788 = vmatpush1.bf16.msra.mxu0 %v595
    %789 = vmatprep.mubr.bf16.mxu0 %v266
    %790 = vmatmul.mubr.bf16.gmra.mrb[0].mxu0 %v265
    %v791 = vpop.f32.mrb[0].mxu0
    %v792 = vadd.f32 0.0, %v791
    %v793 = vpop.f32.mrb[0].mxu0
    %v794 = vadd.f32 0.0, %v793
    %v795 = vpop.f32.mrb[0].mxu0
    %v796 = vpop.f32.mrb[0].mxu0
    %797 = vdwg.mxu0
    %798 = vmatprep.subr.bf16.mxu0 %v598
    %799 = vmatpush1.bf16.msra.mxu0 %v597
    %800 = vmatprep.subr.bf16.mxu0 %v600
    %801 = vmatpush1.bf16.msra.mxu0 %v599
    %802 = vmatprep.subr.bf16.mxu0 %v602
    %803 = vmatpush1.bf16.msra.mxu0 %v601
    %804 = vmatprep.subr.bf16.mxu0 %v604
    %805 = vmatpush1.bf16.msra.mxu0 %v603
    %806 = vmatprep.subr.bf16.mxu0 %v606
    %807 = vmatpush1.bf16.msra.mxu0 %v605
    %808 = vmatprep.subr.bf16.mxu0 %v608
    %809 = vmatpush1.bf16.msra.mxu0 %v607
    %810 = vmatprep.subr.bf16.mxu0 %v610
    %811 = vmatpush1.bf16.msra.mxu0 %v609
    %812 = vmatprep.subr.bf16.mxu0 %v612
    %813 = vmatpush1.bf16.msra.mxu0 %v611
    %814 = vmatprep.subr.bf16.mxu0 %v614
    %815 = vmatpush1.bf16.msra.mxu0 %v613
    %816 = vmatprep.subr.bf16.mxu0 %v616
    %817 = vmatpush1.bf16.msra.mxu0 %v615
    %818 = vmatprep.subr.bf16.mxu0 %v618
    %819 = vmatpush1.bf16.msra.mxu0 %v617
    %820 = vmatprep.subr.bf16.mxu0 %v620
    %821 = vmatpush1.bf16.msra.mxu0 %v619
    %822 = vmatprep.subr.bf16.mxu0 %v622
    %823 = vmatpush1.bf16.msra.mxu0 %v621
    %824 = vmatprep.subr.bf16.mxu0 %v624
    %825 = vmatpush1.bf16.msra.mxu0 %v623
    %826 = vmatprep.subr.bf16.mxu0 %v626
    %827 = vmatpush1.bf16.msra.mxu0 %v625
    %828 = vmatprep.subr.bf16.mxu0 %v628
    %829 = vmatpush1.bf16.msra.mxu0 %v627
    %830 = vmatprep.mubr.bf16.mxu0 %v268
    %831 = vmatmul.mubr.bf16.gmra.mrb[0].mxu0 %v267
    %v832 = vpop.f32.mrb[0].mxu0
    %v833 = vadd.f32 %v792, %v832
    %v834 = vpop.f32.mrb[0].mxu0
    %v835 = vadd.f32 %v794, %v834
    %v836 = vpop.f32.mrb[0].mxu0
    %v837 = vpop.f32.mrb[0].mxu0
    %838 = vdwg.mxu0
    %839 = vmatprep.subr.bf16.mxu0 %v630
    %840 = vmatpush1.bf16.msra.mxu0 %v629
    %841 = vmatprep.subr.bf16.mxu0 %v632
    %842 = vmatpush1.bf16.msra.mxu0 %v631
    %843 = vmatprep.subr.bf16.mxu0 %v634
    %844 = vmatpush1.bf16.msra.mxu0 %v633
    %845 = vmatprep.subr.bf16.mxu0 %v636
    %846 = vmatpush1.bf16.msra.mxu0 %v635
    %847 = vmatprep.subr.bf16.mxu0 %v638
    %848 = vmatpush1.bf16.msra.mxu0 %v637
    %849 = vmatprep.subr.bf16.mxu0 %v640
    %850 = vmatpush1.bf16.msra.mxu0 %v639
    %851 = vmatprep.subr.bf16.mxu0 %v642
    %852 = vmatpush1.bf16.msra.mxu0 %v641
    %853 = vmatprep.subr.bf16.mxu0 %v644
    %854 = vmatpush1.bf16.msra.mxu0 %v643
    %855 = vmatprep.subr.bf16.mxu0 %v646
    %856 = vmatpush1.bf16.msra.mxu0 %v645
    %857 = vmatprep.subr.bf16.mxu0 %v648
    %858 = vmatpush1.bf16.msra.mxu0 %v647
    %859 = vmatprep.subr.bf16.mxu0 %v650
    %860 = vmatpush1.bf16.msra.mxu0 %v649
    %861 = vmatprep.subr.bf16.mxu0 %v652
    %862 = vmatpush1.bf16.msra.mxu0 %v651
    %863 = vmatprep.subr.bf16.mxu0 %v654
    %864 = vmatpush1.bf16.msra.mxu0 %v653
    %865 = vmatprep.subr.bf16.mxu0 %v656
    %866 = vmatpush1.bf16.msra.mxu0 %v655
    %867 = vmatprep.subr.bf16.mxu0 %v658
    %868 = vmatpush1.bf16.msra.mxu0 %v657
    %869 = vmatprep.subr.bf16.mxu0 %v660
    %870 = vmatpush1.bf16.msra.mxu0 %v659
    %871 = vmatprep.mubr.bf16.mxu0 %v270
    %872 = vmatmul.mubr.bf16.gmra.mrb[0].mxu0 %v269
    %v873 = vpop.f32.mrb[0].mxu0
    %v874 = vadd.f32 %v833, %v873
    %v875 = vpop.f32.mrb[0].mxu0
    %v876 = vadd.f32 %v835, %v875
    %v877 = vpop.f32.mrb[0].mxu0
    %v878 = vpop.f32.mrb[0].mxu0
    %879 = vdwg.mxu0
    %v882 = vunpack.c.l.b16 %v91
    %v883 = vunpack.c.h.b16 %v91
    %v884 = vunpack.c.l.b16 %v92
    %v885 = vunpack.c.h.b16 %v92
    %v886 = vpack.c.b16 %v882, %v882
    %v887 = vpack.c.b16 %v883, %v883
    %v888 = vpack.c.b16 %v884, %v884
    %v889 = vpack.c.b16 %v885, %v885
    %v958 = vunpack.c.l.b16 %v96
    %v959 = vunpack.c.h.b16 %v96
    %v960 = vunpack.c.l.b16 %v97
    %v961 = vunpack.c.h.b16 %v97
    %v962 = vunpack.c.l.b16 %v98
    %v963 = vunpack.c.h.b16 %v98
    %v964 = vunpack.c.l.b16 %v99
    %v965 = vunpack.c.h.b16 %v99
    %v966 = vunpack.c.l.b16 %v100
    %v967 = vunpack.c.h.b16 %v100
    %v968 = vunpack.c.l.b16 %v101
    %v969 = vunpack.c.h.b16 %v101
    %v970 = vunpack.c.l.b16 %v102
    %v971 = vunpack.c.h.b16 %v102
    %v972 = vunpack.c.l.b16 %v103
    %v973 = vunpack.c.h.b16 %v103
    %v974 = vunpack.c.l.b16 %v104
    %v975 = vunpack.c.h.b16 %v104
    %v976 = vunpack.c.l.b16 %v105
    %v977 = vunpack.c.h.b16 %v105
    %v978 = vunpack.c.l.b16 %v106
    %v979 = vunpack.c.h.b16 %v106
    %v980 = vunpack.c.l.b16 %v107
    %v981 = vunpack.c.h.b16 %v107
    %v982 = vunpack.c.l.b16 %v108
    %v983 = vunpack.c.h.b16 %v108
    %v984 = vunpack.c.l.b16 %v109
    %v985 = vunpack.c.h.b16 %v109
    %v986 = vunpack.c.l.b16 %v110
    %v987 = vunpack.c.h.b16 %v110
    %v988 = vunpack.c.l.b16 %v111
    %v989 = vunpack.c.h.b16 %v111
    %v990 = vunpack.c.l.b16 %v112
    %v991 = vunpack.c.h.b16 %v112
    %v992 = vunpack.c.l.b16 %v113
    %v993 = vunpack.c.h.b16 %v113
    %v994 = vunpack.c.l.b16 %v114
    %v995 = vunpack.c.h.b16 %v114
    %v996 = vunpack.c.l.b16 %v115
    %v997 = vunpack.c.h.b16 %v115
    %v998 = vunpack.c.l.b16 %v116
    %v999 = vunpack.c.h.b16 %v116
    %v1000 = vunpack.c.l.b16 %v117
    %v1001 = vunpack.c.h.b16 %v117
    %v1002 = vunpack.c.l.b16 %v118
    %v1003 = vunpack.c.h.b16 %v118
    %v1004 = vunpack.c.l.b16 %v119
    %v1005 = vunpack.c.h.b16 %v119
    %v1006 = vunpack.c.l.b16 %v120
    %v1007 = vunpack.c.h.b16 %v120
    %v1008 = vunpack.c.l.b16 %v121
    %v1009 = vunpack.c.h.b16 %v121
    %v1010 = vunpack.c.l.b16 %v122
    %v1011 = vunpack.c.h.b16 %v122
    %v1012 = vunpack.c.l.b16 %v123
    %v1013 = vunpack.c.h.b16 %v123
    %v1014 = vunpack.c.l.b16 %v124
    %v1015 = vunpack.c.h.b16 %v124
    %v1016 = vunpack.c.l.b16 %v125
    %v1017 = vunpack.c.h.b16 %v125
    %v1018 = vunpack.c.l.b16 %v126
    %v1019 = vunpack.c.h.b16 %v126
    %v1020 = vunpack.c.l.b16 %v127
    %v1021 = vunpack.c.h.b16 %v127
    %v1022 = vunpack.c.l.b16 %v128
    %v1023 = vunpack.c.h.b16 %v128
    %v1024 = vunpack.c.l.b16 %v129
    %v1025 = vunpack.c.h.b16 %v129
    %v1026 = vunpack.c.l.b16 %v130
    %v1027 = vunpack.c.h.b16 %v130
    %v1028 = vunpack.c.l.b16 %v131
    %v1029 = vunpack.c.h.b16 %v131
    %v1030 = vunpack.c.l.b16 %v132
    %v1031 = vunpack.c.h.b16 %v132
    %v1032 = vunpack.c.l.b16 %v133
    %v1033 = vunpack.c.h.b16 %v133
    %v1034 = vunpack.c.l.b16 %v134
    %v1035 = vunpack.c.h.b16 %v134
    %v1036 = vunpack.c.l.b16 %v135
    %v1037 = vunpack.c.h.b16 %v135
    %v1038 = vunpack.c.l.b16 %v136
    %v1039 = vunpack.c.h.b16 %v136
    %v1040 = vunpack.c.l.b16 %v137
    %v1041 = vunpack.c.h.b16 %v137
    %v1042 = vunpack.c.l.b16 %v138
    %v1043 = vunpack.c.h.b16 %v138
    %v1044 = vunpack.c.l.b16 %v139
    %v1045 = vunpack.c.h.b16 %v139
    %v1046 = vunpack.c.l.b16 %v140
    %v1047 = vunpack.c.h.b16 %v140
    %v1048 = vunpack.c.l.b16 %v141
    %v1049 = vunpack.c.h.b16 %v141
    %v1050 = vunpack.c.l.b16 %v142
    %v1051 = vunpack.c.h.b16 %v142
    %v1052 = vunpack.c.l.b16 %v143
    %v1053 = vunpack.c.h.b16 %v143
    %v1054 = vunpack.c.l.b16 %v144
    %v1055 = vunpack.c.h.b16 %v144
    %v1056 = vunpack.c.l.b16 %v145
    %v1057 = vunpack.c.h.b16 %v145
    %v1058 = vunpack.c.l.b16 %v146
    %v1059 = vunpack.c.h.b16 %v146
    %v1060 = vunpack.c.l.b16 %v147
    %v1061 = vunpack.c.h.b16 %v147
    %v1062 = vunpack.c.l.b16 %v148
    %v1063 = vunpack.c.h.b16 %v148
    %v1064 = vunpack.c.l.b16 %v149
    %v1065 = vunpack.c.h.b16 %v149
    %v1066 = vunpack.c.l.b16 %v150
    %v1067 = vunpack.c.h.b16 %v150
    %v1068 = vunpack.c.l.b16 %v151
    %v1069 = vunpack.c.h.b16 %v151
    %v1070 = vunpack.c.l.b16 %v152
    %v1071 = vunpack.c.h.b16 %v152
    %v1072 = vunpack.c.l.b16 %v153
    %v1073 = vunpack.c.h.b16 %v153
    %v1074 = vunpack.c.l.b16 %v154
    %v1075 = vunpack.c.h.b16 %v154
    %v1076 = vunpack.c.l.b16 %v155
    %v1077 = vunpack.c.h.b16 %v155
    %v1078 = vunpack.c.l.b16 %v156
    %v1079 = vunpack.c.h.b16 %v156
    %v1080 = vunpack.c.l.b16 %v157
    %v1081 = vunpack.c.h.b16 %v157
    %v1082 = vunpack.c.l.b16 %v158
    %v1083 = vunpack.c.h.b16 %v158
    %v1084 = vunpack.c.l.b16 %v159
    %v1085 = vunpack.c.h.b16 %v159
    %v1086 = vpack.c.b16 %v960, %v958
    %v1087 = vpack.c.b16 %v961, %v959
    %v1088 = vpack.c.b16 %v964, %v962
    %v1089 = vpack.c.b16 %v965, %v963
    %v1090 = vpack.c.b16 %v968, %v966
    %v1091 = vpack.c.b16 %v969, %v967
    %v1092 = vpack.c.b16 %v972, %v970
    %v1093 = vpack.c.b16 %v973, %v971
    %v1094 = vpack.c.b16 %v976, %v974
    %v1095 = vpack.c.b16 %v977, %v975
    %v1096 = vpack.c.b16 %v980, %v978
    %v1097 = vpack.c.b16 %v981, %v979
    %v1098 = vpack.c.b16 %v984, %v982
    %v1099 = vpack.c.b16 %v985, %v983
    %v1100 = vpack.c.b16 %v988, %v986
    %v1101 = vpack.c.b16 %v989, %v987
    %v1102 = vpack.c.b16 %v992, %v990
    %v1103 = vpack.c.b16 %v993, %v991
    %v1104 = vpack.c.b16 %v996, %v994
    %v1105 = vpack.c.b16 %v997, %v995
    %v1106 = vpack.c.b16 %v1000, %v998
    %v1107 = vpack.c.b16 %v1001, %v999
    %v1108 = vpack.c.b16 %v1004, %v1002
    %v1109 = vpack.c.b16 %v1005, %v1003
    %v1110 = vpack.c.b16 %v1008, %v1006
    %v1111 = vpack.c.b16 %v1009, %v1007
    %v1112 = vpack.c.b16 %v1012, %v1010
    %v1113 = vpack.c.b16 %v1013, %v1011
    %v1114 = vpack.c.b16 %v1016, %v1014
    %v1115 = vpack.c.b16 %v1017, %v1015
    %v1116 = vpack.c.b16 %v1020, %v1018
    %v1117 = vpack.c.b16 %v1021, %v1019
    %v1118 = vpack.c.b16 %v1024, %v1022
    %v1119 = vpack.c.b16 %v1025, %v1023
    %v1120 = vpack.c.b16 %v1028, %v1026
    %v1121 = vpack.c.b16 %v1029, %v1027
    %v1122 = vpack.c.b16 %v1032, %v1030
    %v1123 = vpack.c.b16 %v1033, %v1031
    %v1124 = vpack.c.b16 %v1036, %v1034
    %v1125 = vpack.c.b16 %v1037, %v1035
    %v1126 = vpack.c.b16 %v1040, %v1038
    %v1127 = vpack.c.b16 %v1041, %v1039
    %v1128 = vpack.c.b16 %v1044, %v1042
    %v1129 = vpack.c.b16 %v1045, %v1043
    %v1130 = vpack.c.b16 %v1048, %v1046
    %v1131 = vpack.c.b16 %v1049, %v1047
    %v1132 = vpack.c.b16 %v1052, %v1050
    %v1133 = vpack.c.b16 %v1053, %v1051
    %v1134 = vpack.c.b16 %v1056, %v1054
    %v1135 = vpack.c.b16 %v1057, %v1055
    %v1136 = vpack.c.b16 %v1060, %v1058
    %v1137 = vpack.c.b16 %v1061, %v1059
    %v1138 = vpack.c.b16 %v1064, %v1062
    %v1139 = vpack.c.b16 %v1065, %v1063
    %v1140 = vpack.c.b16 %v1068, %v1066
    %v1141 = vpack.c.b16 %v1069, %v1067
    %v1142 = vpack.c.b16 %v1072, %v1070
    %v1143 = vpack.c.b16 %v1073, %v1071
    %v1144 = vpack.c.b16 %v1076, %v1074
    %v1145 = vpack.c.b16 %v1077, %v1075
    %v1146 = vpack.c.b16 %v1080, %v1078
    %v1147 = vpack.c.b16 %v1081, %v1079
    %v1148 = vpack.c.b16 %v1084, %v1082
    %v1149 = vpack.c.b16 %v1085, %v1083
    %1214 = vmatprep.subr.bf16.mxu0 %v1087
    %1215 = vmatpush1.bf16.msra.mxu0 %v1086
    %1216 = vmatprep.subr.bf16.mxu0 %v1089
    %1217 = vmatpush1.bf16.msra.mxu0 %v1088
    %1218 = vmatprep.subr.bf16.mxu0 %v1091
    %1219 = vmatpush1.bf16.msra.mxu0 %v1090
    %1220 = vmatprep.subr.bf16.mxu0 %v1093
    %1221 = vmatpush1.bf16.msra.mxu0 %v1092
    %1222 = vmatprep.subr.bf16.mxu0 %v1095
    %1223 = vmatpush1.bf16.msra.mxu0 %v1094
    %1224 = vmatprep.subr.bf16.mxu0 %v1097
    %1225 = vmatpush1.bf16.msra.mxu0 %v1096
    %1226 = vmatprep.subr.bf16.mxu0 %v1099
    %1227 = vmatpush1.bf16.msra.mxu0 %v1098
    %1228 = vmatprep.subr.bf16.mxu0 %v1101
    %1229 = vmatpush1.bf16.msra.mxu0 %v1100
    %1230 = vmatprep.subr.bf16.mxu0 %v1103
    %1231 = vmatpush1.bf16.msra.mxu0 %v1102
    %1232 = vmatprep.subr.bf16.mxu0 %v1105
    %1233 = vmatpush1.bf16.msra.mxu0 %v1104
    %1234 = vmatprep.subr.bf16.mxu0 %v1107
    %1235 = vmatpush1.bf16.msra.mxu0 %v1106
    %1236 = vmatprep.subr.bf16.mxu0 %v1109
    %1237 = vmatpush1.bf16.msra.mxu0 %v1108
    %1238 = vmatprep.subr.bf16.mxu0 %v1111
    %1239 = vmatpush1.bf16.msra.mxu0 %v1110
    %1240 = vmatprep.subr.bf16.mxu0 %v1113
    %1241 = vmatpush1.bf16.msra.mxu0 %v1112
    %1242 = vmatprep.subr.bf16.mxu0 %v1115
    %1243 = vmatpush1.bf16.msra.mxu0 %v1114
    %1244 = vmatprep.subr.bf16.mxu0 %v1117
    %1245 = vmatpush1.bf16.msra.mxu0 %v1116
    %1246 = vmatprep.mubr.bf16.mxu0 %v887
    %1247 = vmatmul.mubr.bf16.gmra.mrb[0].mxu0 %v886
    %v1248 = vpop.f32.mrb[0].mxu0
    %v1249 = vadd.f32 %v874, %v1248
    %v1250 = vpop.f32.mrb[0].mxu0
    %v1251 = vadd.f32 %v876, %v1250
    %v1252 = vpop.f32.mrb[0].mxu0
    %v1253 = vpop.f32.mrb[0].mxu0
    %1254 = vdwg.mxu0
    %1255 = vmatprep.subr.bf16.mxu0 %v1119
    %1256 = vmatpush1.bf16.msra.mxu0 %v1118
    %1257 = vmatprep.subr.bf16.mxu0 %v1121
    %1258 = vmatpush1.bf16.msra.mxu0 %v1120
    %1259 = vmatprep.subr.bf16.mxu0 %v1123
    %1260 = vmatpush1.bf16.msra.mxu0 %v1122
    %1261 = vmatprep.subr.bf16.mxu0 %v1125
    %1262 = vmatpush1.bf16.msra.mxu0 %v1124
    %1263 = vmatprep.subr.bf16.mxu0 %v1127
    %1264 = vmatpush1.bf16.msra.mxu0 %v1126
    %1265 = vmatprep.subr.bf16.mxu0 %v1129
    %1266 = vmatpush1.bf16.msra.mxu0 %v1128
    %1267 = vmatprep.subr.bf16.mxu0 %v1131
    %1268 = vmatpush1.bf16.msra.mxu0 %v1130
    %1269 = vmatprep.subr.bf16.mxu0 %v1133
    %1270 = vmatpush1.bf16.msra.mxu0 %v1132
    %1271 = vmatprep.subr.bf16.mxu0 %v1135
    %1272 = vmatpush1.bf16.msra.mxu0 %v1134
    %1273 = vmatprep.subr.bf16.mxu0 %v1137
    %1274 = vmatpush1.bf16.msra.mxu0 %v1136
    %1275 = vmatprep.subr.bf16.mxu0 %v1139
    %1276 = vmatpush1.bf16.msra.mxu0 %v1138
    %1277 = vmatprep.subr.bf16.mxu0 %v1141
    %1278 = vmatpush1.bf16.msra.mxu0 %v1140
    %1279 = vmatprep.subr.bf16.mxu0 %v1143
    %1280 = vmatpush1.bf16.msra.mxu0 %v1142
    %1281 = vmatprep.subr.bf16.mxu0 %v1145
    %1282 = vmatpush1.bf16.msra.mxu0 %v1144
    %1283 = vmatprep.subr.bf16.mxu0 %v1147
    %1284 = vmatpush1.bf16.msra.mxu0 %v1146
    %1285 = vmatprep.subr.bf16.mxu0 %v1149
    %1286 = vmatpush1.bf16.msra.mxu0 %v1148
    %1287 = vmatprep.mubr.bf16.mxu0 %v889
    %1288 = vmatmul.mubr.bf16.gmra.mrb[0].mxu0 %v888
    %v1289 = vpop.f32.mrb[0].mxu0
    %v1290 = vadd.f32 %v1249, %v1289
    %v1291 = vpop.f32.mrb[0].mxu0
    %v1292 = vadd.f32 %v1251, %v1291
    %v1293 = vpop.f32.mrb[0].mxu0
    %v1294 = vpop.f32.mrb[0].mxu0
    %1295 = vdwg.mxu0
    %v1296 = vld [vmem:[%s4] sm:$0x3]
    %v1298 = vlaneseq
    %v1299 = vshrl.u32 %v1298, 7
    %v1300 = vsub.s32 0, %v1299
    %v1301 = vrot.slane %v1296, %v1300
    %v1302 = vlaneseq
    %v1303 = vshrl.u32 %v1302, 7
    %v1304 = vsub.s32 1, %v1303
    %v1305 = vrot.slane %v1296, %v1304
    %v1308 = vadd.f32 %v1290, %v1301
    %v1309 = vadd.f32 %v1292, %v1305
    %v1310 = vmax.f32 %v1308, 0.0
    %v1311 = vmax.f32 %v1309, 0.0
    %v1312 = vpack.c.bf16 %v1310, %v1310
    %v1313 = vpack.c.bf16 %v1311, %v1311
    %v1314 = vld [vmem:[#allocation9] sm:$0xf]
    %v1315 = vld [vmem:[#allocation9 + $0x4] sm:$0xf]
    %v1316 = vld [vmem:[#allocation9 + $0x8] sm:$0xf]
    %v1317 = vld [vmem:[#allocation9 + $0xc] sm:$0xf]
    %v1318 = vld [vmem:[#allocation9 + $0x10] sm:$0xf]
    %v1319 = vld [vmem:[#allocation9 + $0x14] sm:$0xf]
    %v1320 = vld [vmem:[#allocation9 + $0x18] sm:$0xf]
    %v1321 = vld [vmem:[#allocation9 + $0x1c] sm:$0xf]
    %v1322 = vld [vmem:[#allocation9 + $0x20] sm:$0xf]
    %v1323 = vld [vmem:[#allocation9 + $0x24] sm:$0xf]
    %v1324 = vld [vmem:[#allocation9 + $0x28] sm:$0xf]
    %v1325 = vld [vmem:[#allocation9 + $0x2c] sm:$0xf]
    %v1326 = vld [vmem:[#allocation9 + $0x30] sm:$0xf]
    %v1327 = vld [vmem:[#allocation9 + $0x34] sm:$0xf]
    %v1328 = vld [vmem:[#allocation9 + $0x38] sm:$0xf]
    %v1329 = vld [vmem:[#allocation9 + $0x3c] sm:$0xf]
    %v1330 = vld [vmem:[#allocation9 + $0x40] sm:$0xf]
    %v1331 = vld [vmem:[#allocation9 + $0x44] sm:$0xf]
    %v1332 = vld [vmem:[#allocation9 + $0x48] sm:$0xf]
    %v1333 = vld [vmem:[#allocation9 + $0x4c] sm:$0xf]
    %v1334 = vld [vmem:[#allocation9 + $0x50] sm:$0xf]
    %v1335 = vld [vmem:[#allocation9 + $0x54] sm:$0xf]
    %v1336 = vld [vmem:[#allocation9 + $0x58] sm:$0xf]
    %v1337 = vld [vmem:[#allocation9 + $0x5c] sm:$0xf]
    %v1338 = vld [vmem:[#allocation9 + $0x60] sm:$0xf]
    %v1339 = vld [vmem:[#allocation9 + $0x64] sm:$0xf]
    %v1340 = vld [vmem:[#allocation9 + $0x68] sm:$0xf]
    %v1341 = vld [vmem:[#allocation9 + $0x6c] sm:$0xf]
    %v1342 = vld [vmem:[#allocation9 + $0x70] sm:$0xf]
    %v1343 = vld [vmem:[#allocation9 + $0x74] sm:$0xf]
    %v1344 = vld [vmem:[#allocation9 + $0x78] sm:$0xf]
    %v1345 = vld [vmem:[#allocation9 + $0x7c] sm:$0xf]
    %v1346 = vld [vmem:[%s6] sm:$0x1]
    %v1348 = vlaneseq
    %v1349 = vshrl.u32 %v1348, 7
    %v1350 = vsub.s32 0, %v1349
    %v1351 = vrot.slane %v1346, %v1350
    %v1385 = vunpack.c.l.b16 %v1314
    %v1386 = vunpack.c.l.b16 %v1315
    %v1387 = vunpack.c.l.b16 %v1316
    %v1388 = vunpack.c.l.b16 %v1317
    %v1389 = vunpack.c.l.b16 %v1318
    %v1390 = vunpack.c.l.b16 %v1319
    %v1391 = vunpack.c.l.b16 %v1320
    %v1392 = vunpack.c.l.b16 %v1321
    %v1393 = vunpack.c.l.b16 %v1322
    %v1394 = vunpack.c.l.b16 %v1323
    %v1395 = vunpack.c.l.b16 %v1324
    %v1396 = vunpack.c.l.b16 %v1325
    %v1397 = vunpack.c.l.b16 %v1326
    %v1398 = vunpack.c.l.b16 %v1327
    %v1399 = vunpack.c.l.b16 %v1328
    %v1400 = vunpack.c.l.b16 %v1329
    %v1401 = vunpack.c.l.b16 %v1330
    %v1402 = vunpack.c.l.b16 %v1331
    %v1403 = vunpack.c.l.b16 %v1332
    %v1404 = vunpack.c.l.b16 %v1333
    %v1405 = vunpack.c.l.b16 %v1334
    %v1406 = vunpack.c.l.b16 %v1335
    %v1407 = vunpack.c.l.b16 %v1336
    %v1408 = vunpack.c.l.b16 %v1337
    %v1409 = vunpack.c.l.b16 %v1338
    %v1410 = vunpack.c.l.b16 %v1339
    %v1411 = vunpack.c.l.b16 %v1340
    %v1412 = vunpack.c.l.b16 %v1341
    %v1413 = vunpack.c.l.b16 %v1342
    %v1414 = vunpack.c.l.b16 %v1343
    %v1415 = vunpack.c.l.b16 %v1344
    %v1416 = vunpack.c.l.b16 %v1345
    %v1417 = vpack.c.b16 %v1386, %v1385
    %v1418 = vpack.c.b16 %v1388, %v1387
    %v1419 = vpack.c.b16 %v1390, %v1389
    %v1420 = vpack.c.b16 %v1392, %v1391
    %v1421 = vpack.c.b16 %v1394, %v1393
    %v1422 = vpack.c.b16 %v1396, %v1395
    %v1423 = vpack.c.b16 %v1398, %v1397
    %v1424 = vpack.c.b16 %v1400, %v1399
    %v1425 = vpack.c.b16 %v1402, %v1401
    %v1426 = vpack.c.b16 %v1404, %v1403
    %v1427 = vpack.c.b16 %v1406, %v1405
    %v1428 = vpack.c.b16 %v1408, %v1407
    %v1429 = vpack.c.b16 %v1410, %v1409
    %v1430 = vpack.c.b16 %v1412, %v1411
    %v1431 = vpack.c.b16 %v1414, %v1413
    %v1432 = vpack.c.b16 %v1416, %v1415
    %1449 = vmatprep.subr.bf16.mxu0 0
    %1450 = vmatpush1.bf16.msra.mxu0 %v1417
    %1451 = vmatprep.subr.bf16.mxu0 0
    %1452 = vmatpush1.bf16.msra.mxu0 %v1418
    %1453 = vmatprep.subr.bf16.mxu0 0
    %1454 = vmatpush1.bf16.msra.mxu0 %v1419
    %1455 = vmatprep.subr.bf16.mxu0 0
    %1456 = vmatpush1.bf16.msra.mxu0 %v1420
    %1457 = vmatprep.subr.bf16.mxu0 0
    %1458 = vmatpush1.bf16.msra.mxu0 %v1421
    %1459 = vmatprep.subr.bf16.mxu0 0
    %1460 = vmatpush1.bf16.msra.mxu0 %v1422
    %1461 = vmatprep.subr.bf16.mxu0 0
    %1462 = vmatpush1.bf16.msra.mxu0 %v1423
    %1463 = vmatprep.subr.bf16.mxu0 0
    %1464 = vmatpush1.bf16.msra.mxu0 %v1424
    %1465 = vmatprep.subr.bf16.mxu0 0
    %1466 = vmatpush1.bf16.msra.mxu0 %v1425
    %1467 = vmatprep.subr.bf16.mxu0 0
    %1468 = vmatpush1.bf16.msra.mxu0 %v1426
    %1469 = vmatprep.subr.bf16.mxu0 0
    %1470 = vmatpush1.bf16.msra.mxu0 %v1427
    %1471 = vmatprep.subr.bf16.mxu0 0
    %1472 = vmatpush1.bf16.msra.mxu0 %v1428
    %1473 = vmatprep.subr.bf16.mxu0 0
    %1474 = vmatpush1.bf16.msra.mxu0 %v1429
    %1475 = vmatprep.subr.bf16.mxu0 0
    %1476 = vmatpush1.bf16.msra.mxu0 %v1430
    %1477 = vmatprep.subr.bf16.mxu0 0
    %1478 = vmatpush1.bf16.msra.mxu0 %v1431
    %1479 = vmatprep.subr.bf16.mxu0 0
    %1480 = vmatpush1.bf16.msra.mxu0 %v1432
    %1481 = vmatprep.mubr.bf16.mxu0 %v1313
    %1482 = vmatmul.mubr.bf16.gmra.mrb[0].mxu0 %v1312
    %v1483 = vpop.f32.mrb[0].mxu0
    %v1484 = vadd.f32 %v1351, %v1483
    %v1485 = vpop.f32.mrb[0].mxu0
    %v1486 = vpop.f32.mrb[0].mxu0
    %v1487 = vpop.f32.mrb[0].mxu0
    %1488 = vdwg.mxu0
    %v1489 = vpack.c.bf16 %v1484, %v1484
    %1490 = vst [vmem:[%s7] sm:$0xf] %v1489
    // Predicated region
    $region50: #{_forward_impl.1} parent=1 // pred_check
      _
    $region51: #{_forward_impl.1} parent=1 // pred_check_branch
      %1492 = sbr.rel (0) target = $region53
    $region52: #{_forward_impl.1} parent=1 // pred_region
      _
    $region53: #{_forward_impl.1} parent=1 // pred_fallthru
      _
    // Predicated region
    $region54: #{_forward_impl.1} parent=1 // pred_check
      _
    $region55: #{_forward_impl.1} parent=1 // pred_check_branch
      %1494 = sbr.rel (0) target = $region57
    $region56: #{_forward_impl.1} parent=1 // pred_region
      _
    $region57: #{_forward_impl.1} parent=1 // pred_fallthru
      _
    %1495 = vsyncpa [#allocation3], 1
    %1496 = vsyncpa [#allocation5], 1
    %1497 = vsyncpa [#allocation8], 1

</llo_original>
